<compile_context>
chip_gen: v5e
topology: v5e:2x2
jax: 0.10.0
libtpu: 0.0.40
codegen_flags: <defaults>
</compile_context>

<pallas_src>
import jax
import jax.numpy as jnp
from jax.experimental import pallas as pl
from jax.experimental.pallas import tpu as pltpu


def _round_up(x, m):
    return ((x + m - 1) // m) * m


def graphsage_kernel(mask_ref, feat_ref, invdeg_ref, selff_ref,
                     w_top_ref, w_bot_ref, w_cls_ref, out_ref, acc_ref):
    k = pl.program_id(1)

    @pl.when(k == 0)
    def _():
        acc_ref[...] = jnp.zeros_like(acc_ref)

    # MeanAggregator partial sum: (TB, tn) @ (tn, F) -> f32 VMEM accumulator.
    acc_ref[...] += jnp.dot(mask_ref[...], feat_ref[...],
                            preferred_element_type=jnp.float32)

    @pl.when(k == pl.num_programs(1) - 1)
    def _():
        # Mean normalization in f32 (1/deg never touches the MXU operands).
        neigh = (acc_ref[...] * invdeg_ref[...]).astype(w_bot_ref.dtype)
        # Encoder: two K=F MXU dots accumulated in f32 (no lane-misaligned concat).
        h = jnp.dot(selff_ref[...], w_top_ref[...],
                    preferred_element_type=jnp.float32)
        h = h + jnp.dot(neigh, w_bot_ref[...],
                        preferred_element_type=jnp.float32)
        embeds = jnp.maximum(h, 0.0).astype(w_cls_ref.dtype)
        # Classifier: lane-dense (TB, Cp) bf16 store (unmasked vst).
        out_ref[...] = jnp.dot(embeds, w_cls_ref[...],
                               preferred_element_type=jnp.float32
                               ).astype(out_ref.dtype)


def prepare_params(w_enc, w_cls, compute_dtype=jnp.bfloat16, lane=128):
    """One-time layout prep (hoisted out of the per-forward path):
       w_enc (E, 2F) -> W_top (F, Ep), W_bot (F, Ep);  w_cls (C, E) -> (Ep, Cp);
       all transposed, zero-padded lane-dense, cast to bf16."""
    E, twoF = w_enc.shape
    F = twoF // 2
    C, E2 = w_cls.shape
    assert E2 == E and twoF == 2 * F
    Ep = _round_up(E, lane)
    Cp = _round_up(C, lane)
    w_enc_t = jnp.transpose(w_enc).astype(compute_dtype)          # (2F, E)
    w_top = jnp.zeros((F, Ep), compute_dtype).at[:, :E].set(w_enc_t[:F])
    w_bot = jnp.zeros((F, Ep), compute_dtype).at[:, :E].set(w_enc_t[F:])
    w_cls_t = jnp.zeros((Ep, Cp), compute_dtype).at[:E, :C].set(
        jnp.transpose(w_cls).astype(compute_dtype))
    return w_top, w_bot, w_cls_t


def supervised_graphsage_forward(mask01, inv_deg, features, self_feats,
                                 w_top, w_bot, w_cls_t, num_classes,
                                 *, block_b=None, tn=512,
                                 compute_dtype=jnp.bfloat16,
                                 vmem_limit_bytes=48 * 1024 * 1024):
    """mask01 (B,N) raw 0/1, inv_deg (B,1) f32, features (N,F), self_feats (B,F),
       w_top/w_bot (F,Ep), w_cls_t (Ep,Cp)  ->  scores (B, num_classes) f32."""
    B, N = mask01.shape
    Nf, F = features.shape
    Fw, Ep = w_top.shape
    Fb, Epb = w_bot.shape
    Ep2, Cp = w_cls_t.shape
    assert Nf == N and Fw == F and Fb == F and Epb == Ep and Ep2 == Ep
    assert self_feats.shape == (B, F) and inv_deg.shape == (B, 1)

    # Batch tile: 512 for large batches (amortize per-step overhead), 128 otherwise.
    if block_b is None:
        block_b = 512 if B >= 512 else 128
    Bp = _round_up(max(B, block_b), block_b)

    # Reduction tile over N (multiple of 128 lanes); Np divisible by tn.
    tn = min(tn, _round_up(N, 128))
    Np = _round_up(N, tn)

    mask_p = jnp.zeros((Bp, Np), compute_dtype).at[:B, :N].set(
        mask01.astype(compute_dtype))
    inv_p = jnp.zeros((Bp, 1), jnp.float32).at[:B].set(inv_deg.astype(jnp.float32))
    self_p = jnp.zeros((Bp, F), compute_dtype).at[:B].set(
        self_feats.astype(compute_dtype))
    feat_p = jnp.zeros((Np, F), compute_dtype).at[:N].set(
        features.astype(compute_dtype))

    grid = (Bp // block_b, Np // tn)

    flops = 2 * Bp * (Np * F + 2 * F * Ep + Ep * Cp)
    bytes_accessed = (2 * (mask_p.size + self_p.size + w_top.size + w_bot.size
                           + w_cls_t.size)
                      + 2 * feat_p.size * grid[0]
                      + 4 * inv_p.size + 2 * Bp * Cp)

    scores_p = pl.pallas_call(
        graphsage_kernel,
        out_shape=jax.ShapeDtypeStruct((Bp, Cp), compute_dtype),
        grid=grid,
        in_specs=[
            pl.BlockSpec((block_b, tn), lambda i, k: (i, k),
                         memory_space=pltpu.MemorySpace.VMEM),
            pl.BlockSpec((tn, F), lambda i, k: (k, 0),
                         memory_space=pltpu.MemorySpace.VMEM),
            pl.BlockSpec((block_b, 1), lambda i, k: (i, 0),
                         memory_space=pltpu.MemorySpace.VMEM),
            pl.BlockSpec((block_b, F), lambda i, k: (i, 0),
                         memory_space=pltpu.MemorySpace.VMEM),
            # Grid-invariant weights: single-buffered to save VMEM (v7x 64 MiB).
            pl.BlockSpec((F, Ep), lambda i, k: (0, 0),
                         memory_space=pltpu.MemorySpace.VMEM,
                         pipeline_mode=pl.Buffered(1)),
            pl.BlockSpec((F, Ep), lambda i, k: (0, 0),
                         memory_space=pltpu.MemorySpace.VMEM,
                         pipeline_mode=pl.Buffered(1)),
            pl.BlockSpec((Ep, Cp), lambda i, k: (0, 0),
                         memory_space=pltpu.MemorySpace.VMEM,
                         pipeline_mode=pl.Buffered(1)),
        ],
        out_specs=pl.BlockSpec((block_b, Cp), lambda i, k: (i, 0),
                               memory_space=pltpu.MemorySpace.VMEM),
        scratch_shapes=[pltpu.VMEM((block_b, F), jnp.float32)],
        compiler_params=pltpu.CompilerParams(
            dimension_semantics=("parallel", "arbitrary"),
            vmem_limit_bytes=vmem_limit_bytes),
        cost_estimate=pl.CostEstimate(flops=flops, transcendentals=0,
                                      bytes_accessed=bytes_accessed),
    )(mask_p, feat_p, inv_p, self_p, w_top, w_bot, w_cls_t)

    return scores_p[:B, :num_classes].astype(jnp.float32)


def xavier_uniform(key, shape):
    fan_out, fan_in = shape
    bound = (6.0 / (fan_in + fan_out)) ** 0.5
    return jax.random.uniform(key, shape, jnp.float32, -bound, bound)


if __name__ == "__main__":
    key = jax.random.PRNGKey(0)
    k_feat, k_adj, k_wenc, k_wcls = jax.random.split(key, 4)

    num_nodes = 64     # N
    feat_dim = 32      # F
    embed_dim = 32     # E
    num_classes = 8    # C
    batch = 8          # B

    # nn.Embedding-style node feature table (deterministic).
    features = jax.random.normal(k_feat, (num_nodes, feat_dim), jnp.float32)

    # Deterministic adjacency; guarantee >= 1 neighbor per batch node.
    adj = (jax.random.uniform(k_adj, (num_nodes, num_nodes)) < 0.15
           ).astype(jnp.float32)
    adj = jnp.maximum(adj, jnp.roll(jnp.eye(num_nodes, dtype=jnp.float32), 1, axis=1))

    # Batch of node ids; raw 0/1 neighbor mask + f32 1/deg (post-matmul normalize).
    nodes = jnp.arange(batch, dtype=jnp.int32)
    mask01 = adj[nodes]                                           # (B, N)
    deg = jnp.sum(mask01, axis=1, keepdims=True)
    # TODO(synk): torch MeanAggregator divides by zero (NaN) for isolated nodes;
    #             here max(deg, 1) maps them to zero neighbor features instead.
    inv_deg = 1.0 / jnp.maximum(deg, 1.0)                         # (B, 1) f32
    self_feats = features[nodes]                                  # (B, F)

    # Xavier-uniform parameters (shapes from Encoder / SupervisedGraphSage init).
    w_enc = xavier_uniform(k_wenc, (embed_dim, 2 * feat_dim))     # (E, 2F)
    w_cls = xavier_uniform(k_wcls, (num_classes, embed_dim))      # (C, E)

    # One-time parameter layout prep (split/transpose/pad hoisted here).
    w_top, w_bot, w_cls_t = prepare_params(w_enc, w_cls)

    scores = supervised_graphsage_forward(mask01, inv_deg, features, self_feats,
                                          w_top, w_bot, w_cls_t, num_classes)
    scores = jax.block_until_ready(scores)

    # Pure-JAX reference mirroring the torch math at the kernel's bf16 cast points.
    q = lambda x: x.astype(jnp.bfloat16).astype(jnp.float32)
    neigh_ref = (q(mask01) @ q(features)) * inv_deg               # f32 normalize
    h_ref = (q(self_feats) @ q(w_enc[:, :feat_dim].T)
             + q(neigh_ref) @ q(w_enc[:, feat_dim:].T))
    embeds_ref = jnp.maximum(h_ref, 0.0)
    scores_ref = q(q(embeds_ref) @ q(w_cls.T))                    # bf16 output cast

    assert scores.shape == (batch, num_classes)
    assert jnp.allclose(scores, scores_ref, atol=2e-2, rtol=2e-2)
    print("KERNEL_OK")
</pallas_src>

<mosaic_0001>
module attributes {stable_mosaic.version = 11 : i64} {
  func.func @graphsage_kernel(%arg0: i32, %arg1: i32, %arg2: memref<128x128xbf16, #tpu.memory_space<vmem>>, %arg3: memref<128x32xbf16, #tpu.memory_space<vmem>>, %arg4: memref<128x1xf32, #tpu.memory_space<vmem>>, %arg5: memref<128x32xbf16, #tpu.memory_space<vmem>>, %arg6: memref<32x128xbf16, #tpu.memory_space<vmem>>, %arg7: memref<32x128xbf16, #tpu.memory_space<vmem>>, %arg8: memref<128x128xbf16, #tpu.memory_space<vmem>>, %arg9: memref<128x128xbf16, #tpu.memory_space<vmem>>, %arg10: memref<128x32xf32, #tpu.memory_space<vmem>>) attributes {dimension_semantics = [#tpu.dimension_semantics<parallel>, #tpu.dimension_semantics<arbitrary>], iteration_bounds = array<i64: 1, 1>, scalar_prefetch = 0 : i64, scratch_operands = 1 : i64, tpu.core_type = #tpu.core_type<tc>, window_params = [{transform_indices = @transform_0, window_bounds = array<i64: 128, 128>}, {transform_indices = @transform_1, window_bounds = array<i64: 128, 32>}, {transform_indices = @transform_2, window_bounds = array<i64: 128, 1>}, {transform_indices = @transform_3, window_bounds = array<i64: 128, 32>}, {pipeline_mode = #tpu.pipeline_mode<synchronous>, transform_indices = @transform_4, window_bounds = array<i64: 32, 128>}, {pipeline_mode = #tpu.pipeline_mode<synchronous>, transform_indices = @transform_5, window_bounds = array<i64: 32, 128>}, {pipeline_mode = #tpu.pipeline_mode<synchronous>, transform_indices = @transform_6, window_bounds = array<i64: 128, 128>}, {transform_indices = @transform_7, window_bounds = array<i64: 128, 128>}]} {
    %c0_i32 = arith.constant 0 : i32
    %0 = arith.cmpi eq, %arg1, %c0_i32 : i32
    %1 = arith.extui %0 : i1 to i32
    %c0_i32_0 = arith.constant 0 : i32
    %2 = arith.cmpi ne, %1, %c0_i32_0 : i32
    scf.if %2 {
      %cst_10 = arith.constant 0.000000e+00 : f32
      %12 = vector.broadcast %cst_10 : f32 to vector<128x32xf32>
      %c0_11 = arith.constant 0 : index
      %c0_12 = arith.constant 0 : index
      %13 = vector.load %arg10[%c0_11, %c0_12] : memref<128x32xf32, #tpu.memory_space<vmem>>, vector<128x32xf32>
      tpu.vector_store %arg10[%c0_11, %c0_12], %12 {strides = array<i32>} : memref<128x32xf32, #tpu.memory_space<vmem>>, vector<128x32xf32>,
    } else {
    }
    %c0 = arith.constant 0 : index
    %c0_1 = arith.constant 0 : index
    %3 = vector.load %arg10[%c0, %c0_1] : memref<128x32xf32, #tpu.memory_space<vmem>>, vector<128x32xf32>
    %c0_2 = arith.constant 0 : index
    %c0_3 = arith.constant 0 : index
    %4 = vector.load %arg2[%c0_2, %c0_3] : memref<128x128xbf16, #tpu.memory_space<vmem>>, vector<128x128xbf16>
    %c0_4 = arith.constant 0 : index
    %c0_5 = arith.constant 0 : index
    %5 = vector.load %arg3[%c0_4, %c0_5] : memref<128x32xbf16, #tpu.memory_space<vmem>>, vector<128x32xbf16>
    %cst = arith.constant dense<0.000000e+00> : vector<128x32xf32>
    %6 = tpu.matmul %4, %5, %cst {dimension_numbers = #tpu.dot_dimension_numbers<[1], [0], [0], [1], [0, 0, 1, 1], [], []>} : vector<128x128xbf16>, vector<128x32xbf16>, vector<128x32xf32> -> vector<128x32xf32>
    %7 = arith.addf %3, %6 : vector<128x32xf32>
    %c0_6 = arith.constant 0 : index
    %c0_7 = arith.constant 0 : index
    %8 = vector.load %arg10[%c0_6, %c0_7] : memref<128x32xf32, #tpu.memory_space<vmem>>, vector<128x32xf32>
    tpu.vector_store %arg10[%c0_6, %c0_7], %7 {strides = array<i32>} : memref<128x32xf32, #tpu.memory_space<vmem>>, vector<128x32xf32>,
    %c0_i32_8 = arith.constant 0 : i32
    %9 = arith.cmpi eq, %arg1, %c0_i32_8 : i32
    %10 = arith.extui %9 : i1 to i32
    %c0_i32_9 = arith.constant 0 : i32
    %11 = arith.cmpi ne, %10, %c0_i32_9 : i32
    scf.if %11 {
      %c0_10 = arith.constant 0 : index
      %c0_11 = arith.constant 0 : index
      %12 = vector.load %arg10[%c0_10, %c0_11] : memref<128x32xf32, #tpu.memory_space<vmem>>, vector<128x32xf32>
      %c0_12 = arith.constant 0 : index
      %c0_13 = arith.constant 0 : index
      %13 = vector.load %arg4[%c0_12, %c0_13] : memref<128x1xf32, #tpu.memory_space<vmem>>, vector<128x1xf32>
      %14 = vector.broadcast %13 : vector<128x1xf32> to vector<128x32xf32>
      %15 = arith.mulf %12, %14 : vector<128x32xf32>
      %16 = arith.truncf %15 : vector<128x32xf32> to vector<128x32xbf16>
      %c0_14 = arith.constant 0 : index
      %c0_15 = arith.constant 0 : index
      %17 = vector.load %arg5[%c0_14, %c0_15] : memref<128x32xbf16, #tpu.memory_space<vmem>>, vector<128x32xbf16>
      %c0_16 = arith.constant 0 : index
      %c0_17 = arith.constant 0 : index
      %18 = vector.load %arg6[%c0_16, %c0_17] : memref<32x128xbf16, #tpu.memory_space<vmem>>, vector<32x128xbf16>
      %cst_18 = arith.constant dense<0.000000e+00> : vector<128x128xf32>
      %19 = tpu.matmul %17, %18, %cst_18 {dimension_numbers = #tpu.dot_dimension_numbers<[1], [0], [0], [1], [0, 0, 1, 1], [], []>} : vector<128x32xbf16>, vector<32x128xbf16>, vector<128x128xf32> -> vector<128x128xf32>
      %c0_19 = arith.constant 0 : index
      %c0_20 = arith.constant 0 : index
      %20 = vector.load %arg7[%c0_19, %c0_20] : memref<32x128xbf16, #tpu.memory_space<vmem>>, vector<32x128xbf16>
      %cst_21 = arith.constant dense<0.000000e+00> : vector<128x128xf32>
      %21 = tpu.matmul %16, %20, %cst_21 {dimension_numbers = #tpu.dot_dimension_numbers<[1], [0], [0], [1], [0, 0, 1, 1], [], []>} : vector<128x32xbf16>, vector<32x128xbf16>, vector<128x128xf32> -> vector<128x128xf32>
      %22 = arith.addf %19, %21 : vector<128x128xf32>
      %cst_22 = arith.constant 0.000000e+00 : f32
      %23 = vector.broadcast %cst_22 : f32 to vector<128x128xf32>
      %24 = arith.maximumf %22, %23 : vector<128x128xf32>
      %25 = arith.truncf %24 : vector<128x128xf32> to vector<128x128xbf16>
      %c0_23 = arith.constant 0 : index
      %c0_24 = arith.constant 0 : index
      %26 = vector.load %arg8[%c0_23, %c0_24] : memref<128x128xbf16, #tpu.memory_space<vmem>>, vector<128x128xbf16>
      %cst_25 = arith.constant dense<0.000000e+00> : vector<128x128xf32>
      %27 = tpu.matmul %25, %26, %cst_25 {dimension_numbers = #tpu.dot_dimension_numbers<[1], [0], [0], [1], [0, 0, 1, 1], [], []>} : vector<128x128xbf16>, vector<128x128xbf16>, vector<128x128xf32> -> vector<128x128xf32>
      %28 = arith.truncf %27 : vector<128x128xf32> to vector<128x128xbf16>
      %c0_26 = arith.constant 0 : index
      %c0_27 = arith.constant 0 : index
      %29 = vector.load %arg9[%c0_26, %c0_27] : memref<128x128xbf16, #tpu.memory_space<vmem>>, vector<128x128xbf16>
      tpu.vector_store %arg9[%c0_26, %c0_27], %28 {strides = array<i32>} : memref<128x128xbf16, #tpu.memory_space<vmem>>, vector<128x128xbf16>,
    } else {
    }
    return
  }
  func.func @transform_0(%arg0: i32, %arg1: i32) -> (i32, i32) {
    %c0_i32 = arith.constant 0 : i32
    return %arg0, %arg1 : i32, i32
  }
  func.func @transform_1(%arg0: i32, %arg1: i32) -> (i32, i32) {
    %c0_i32 = arith.constant 0 : i32
    %c0_i32_0 = arith.constant 0 : i32
    return %arg1, %c0_i32 : i32, i32
  }
  func.func @transform_2(%arg0: i32, %arg1: i32) -> (i32, i32) {
    %c0_i32 = arith.constant 0 : i32
    %c0_i32_0 = arith.constant 0 : i32
    return %arg0, %c0_i32 : i32, i32
  }
  func.func @transform_3(%arg0: i32, %arg1: i32) -> (i32, i32) {
    %c0_i32 = arith.constant 0 : i32
    %c0_i32_0 = arith.constant 0 : i32
    return %arg0, %c0_i32 : i32, i32
  }
  func.func @transform_4(%arg0: i32, %arg1: i32) -> (i32, i32) {
    %c0_i32 = arith.constant 0 : i32
    %c0_i32_0 = arith.constant 0 : i32
    %c0_i32_1 = arith.constant 0 : i32
    return %c0_i32, %c0_i32_0 : i32, i32
  }
  func.func @transform_5(%arg0: i32, %arg1: i32) -> (i32, i32) {
    %c0_i32 = arith.constant 0 : i32
    %c0_i32_0 = arith.constant 0 : i32
    %c0_i32_1 = arith.constant 0 : i32
    return %c0_i32, %c0_i32_0 : i32, i32
  }
  func.func @transform_6(%arg0: i32, %arg1: i32) -> (i32, i32) {
    %c0_i32 = arith.constant 0 : i32
    %c0_i32_0 = arith.constant 0 : i32
    %c0_i32_1 = arith.constant 0 : i32
    return %c0_i32, %c0_i32_0 : i32, i32
  }
  func.func @transform_7(%arg0: i32, %arg1: i32) -> (i32, i32) {
    %c0_i32 = arith.constant 0 : i32
    %c0_i32_0 = arith.constant 0 : i32
    return %arg0, %c0_i32 : i32, i32
  }
}

</mosaic_0001>

<llo_original>
// kernel: tpu_custom_call.1
$region0: #{tpu_custom_call.1}
  #allocation0 [shape = 'u32[]', space=smem, size = 0x4, offset = 0x4, fixed_abs, tag = 'smem constant byte address 0x4 - core index']
  #allocation1 [shape = 'u32[72,128]{1,0:T(1,128)}', space=vmem, size = 0x9000, scoped, tag = 'internal scratch']
  #allocation2 [shape = 'f32[128,32]{1,0:T(8,128)}', space=vmem, size = 0x10000, scoped, tag = 'scratch operand']
  %s0 = inlined_call_operand.vmem [shape: bf16[128,128], index: 0, kind: input, shape index: {}]
  %s1 = inlined_call_operand.vmem [shape: bf16[128,32], index: 1, kind: input, shape index: {}]
  %s2 = inlined_call_operand.vmem [shape: f32[128,1], index: 2, kind: input, shape index: {}]
  %s3 = inlined_call_operand.vmem [shape: bf16[128,32], index: 3, kind: input, shape index: {}]
  %s4 = inlined_call_operand.vmem [shape: bf16[32,128], index: 4, kind: input, shape index: {}]
  %s5 = inlined_call_operand.vmem [shape: bf16[32,128], index: 5, kind: input, shape index: {}]
  %s6 = inlined_call_operand.vmem [shape: bf16[128,128], index: 6, kind: input, shape index: {}]
  %s7 = inlined_call_operand.hbm [shape: bf16[128,128], index: 7, kind: output, shape index: {}]
  %s8 = sld [smem:[#allocation0]]
  $region46: #{tpu_custom_call.1} parent=0
    _
  %s10 = ssub.s32 1, %s8
  %s11 = scalar_select 0, %s10, %s8
  $region1: #{tpu_custom_call.1} parent=0
    #allocation3 [shape = 'u8[32768]{0}', space=vmem, size = 0x8000, scoped, tag = 'output window, operand 0, single buffered']
    #allocation4 [shape = 's32[1]{0}', space=sflag, size = 0x4, scoped, tag = 'scoped memory for tpu_custom_call.1']
    %12 = vsyncpa [#allocation4], 0
    // Predicated region
    $region2: #{tpu_custom_call.1} parent=1 // pred_check
      _
    $region3: #{tpu_custom_call.1} parent=1 // pred_check_branch
      %14 = sbr.rel (0) target = $region5
    $region4: #{tpu_custom_call.1} parent=1 // pred_region
      _
    $region5: #{tpu_custom_call.1} parent=1 // pred_fallthru
      _
    // Predicated region
    $region6: #{tpu_custom_call.1} parent=1 // pred_check
      _
    $region7: #{tpu_custom_call.1} parent=1 // pred_check_branch
      %16 = sbr.rel (0) target = $region9
    $region8: #{tpu_custom_call.1} parent=1 // pred_region
      _
    $region9: #{tpu_custom_call.1} parent=1 // pred_fallthru
      _
    // Predicated region
    $region10: #{tpu_custom_call.1} parent=1 // pred_check
      _
    $region11: #{tpu_custom_call.1} parent=1 // pred_check_branch
      %18 = sbr.rel (0) target = $region13
    $region12: #{tpu_custom_call.1} parent=1 // pred_region
      _
    $region13: #{tpu_custom_call.1} parent=1 // pred_fallthru
      _
    // Predicated region
    $region14: #{tpu_custom_call.1} parent=1 // pred_check
      _
    $region15: #{tpu_custom_call.1} parent=1 // pred_check_branch
      %20 = sbr.rel (0) target = $region17
    $region16: #{tpu_custom_call.1} parent=1 // pred_region
      _
    $region17: #{tpu_custom_call.1} parent=1 // pred_fallthru
      _
    // Predicated region
    $region18: #{tpu_custom_call.1} parent=1 // pred_check
      _
    $region19: #{tpu_custom_call.1} parent=1 // pred_check_branch
      %22 = sbr.rel (0) target = $region21
    $region20: #{tpu_custom_call.1} parent=1 // pred_region
      _
    $region21: #{tpu_custom_call.1} parent=1 // pred_fallthru
      _
    // Predicated region
    $region22: #{tpu_custom_call.1} parent=1 // pred_check
      _
    $region23: #{tpu_custom_call.1} parent=1 // pred_check_branch
      %24 = sbr.rel (0) target = $region25
    $region24: #{tpu_custom_call.1} parent=1 // pred_region
      _
    $region25: #{tpu_custom_call.1} parent=1 // pred_fallthru
      _
    // Predicated region
    $region26: #{tpu_custom_call.1} parent=1 // pred_check
      _
    $region27: #{tpu_custom_call.1} parent=1 // pred_check_branch
      %26 = sbr.rel (0) target = $region29
    $region28: #{tpu_custom_call.1} parent=1 // pred_region
      _
    $region29: #{tpu_custom_call.1} parent=1 // pred_fallthru
      _
    %p28 = scmp.eq.s32.totalorder 0, 0
    // Predicated region
    $region30: #{tpu_custom_call.1} parent=1 // pred_check
      %p29 = pneg %p28
    $region31: #{tpu_custom_call.1} parent=1 // pred_check_branch
      %31 = sbr.rel (%p29) target = $region33
    $region32: #{tpu_custom_call.1} parent=1 // pred_region
      %vm32 = vcmask 261120
      %33 = vst.msk [vmem:[#allocation2] sm:$0xff] %vm32, 0.0
      %34 = vst.msk [vmem:[#allocation2 + $0x8] sm:$0xff] %vm32, 0.0
      %35 = vst.msk [vmem:[#allocation2 + $0x10] sm:$0xff] %vm32, 0.0
      %36 = vst.msk [vmem:[#allocation2 + $0x18] sm:$0xff] %vm32, 0.0
      %37 = vst.msk [vmem:[#allocation2 + $0x20] sm:$0xff] %vm32, 0.0
      %38 = vst.msk [vmem:[#allocation2 + $0x28] sm:$0xff] %vm32, 0.0
      %39 = vst.msk [vmem:[#allocation2 + $0x30] sm:$0xff] %vm32, 0.0
      %40 = vst.msk [vmem:[#allocation2 + $0x38] sm:$0xff] %vm32, 0.0
      %41 = vst.msk [vmem:[#allocation2 + $0x40] sm:$0xff] %vm32, 0.0
      %42 = vst.msk [vmem:[#allocation2 + $0x48] sm:$0xff] %vm32, 0.0
      %43 = vst.msk [vmem:[#allocation2 + $0x50] sm:$0xff] %vm32, 0.0
      %44 = vst.msk [vmem:[#allocation2 + $0x58] sm:$0xff] %vm32, 0.0
      %45 = vst.msk [vmem:[#allocation2 + $0x60] sm:$0xff] %vm32, 0.0
      %46 = vst.msk [vmem:[#allocation2 + $0x68] sm:$0xff] %vm32, 0.0
      %47 = vst.msk [vmem:[#allocation2 + $0x70] sm:$0xff] %vm32, 0.0
      %48 = vst.msk [vmem:[#allocation2 + $0x78] sm:$0xff] %vm32, 0.0
    $region33: #{tpu_custom_call.1} parent=1 // pred_fallthru
      _
    %v49 = vld [vmem:[#allocation2] sm:$0xff]
    %v50 = vld [vmem:[#allocation2 + $0x8] sm:$0xff]
    %v51 = vld [vmem:[#allocation2 + $0x10] sm:$0xff]
    %v52 = vld [vmem:[#allocation2 + $0x18] sm:$0xff]
    %v53 = vld [vmem:[#allocation2 + $0x20] sm:$0xff]
    %v54 = vld [vmem:[#allocation2 + $0x28] sm:$0xff]
    %v55 = vld [vmem:[#allocation2 + $0x30] sm:$0xff]
    %v56 = vld [vmem:[#allocation2 + $0x38] sm:$0xff]
    %v57 = vld [vmem:[#allocation2 + $0x40] sm:$0xff]
    %v58 = vld [vmem:[#allocation2 + $0x48] sm:$0xff]
    %v59 = vld [vmem:[#allocation2 + $0x50] sm:$0xff]
    %v60 = vld [vmem:[#allocation2 + $0x58] sm:$0xff]
    %v61 = vld [vmem:[#allocation2 + $0x60] sm:$0xff]
    %v62 = vld [vmem:[#allocation2 + $0x68] sm:$0xff]
    %v63 = vld [vmem:[#allocation2 + $0x70] sm:$0xff]
    %v64 = vld [vmem:[#allocation2 + $0x78] sm:$0xff]
    %v65 = vld [vmem:[%s0] sm:$0xf]
    %v66 = vld [vmem:[%s0 + $0x4] sm:$0xf]
    %v67 = vld [vmem:[%s0 + $0x8] sm:$0xf]
    %v68 = vld [vmem:[%s0 + $0xc] sm:$0xf]
    %v69 = vld [vmem:[%s0 + $0x10] sm:$0xf]
    %v70 = vld [vmem:[%s0 + $0x14] sm:$0xf]
    %v71 = vld [vmem:[%s0 + $0x18] sm:$0xf]
    %v72 = vld [vmem:[%s0 + $0x1c] sm:$0xf]
    %v73 = vld [vmem:[%s0 + $0x20] sm:$0xf]
    %v74 = vld [vmem:[%s0 + $0x24] sm:$0xf]
    %v75 = vld [vmem:[%s0 + $0x28] sm:$0xf]
    %v76 = vld [vmem:[%s0 + $0x2c] sm:$0xf]
    %v77 = vld [vmem:[%s0 + $0x30] sm:$0xf]
    %v78 = vld [vmem:[%s0 + $0x34] sm:$0xf]
    %v79 = vld [vmem:[%s0 + $0x38] sm:$0xf]
    %v80 = vld [vmem:[%s0 + $0x3c] sm:$0xf]
    %v81 = vld [vmem:[%s1] sm:$0xf]
    %v82 = vld [vmem:[%s1 + $0x4] sm:$0xf]
    %v83 = vld [vmem:[%s1 + $0x8] sm:$0xf]
    %v84 = vld [vmem:[%s1 + $0xc] sm:$0xf]
    %v85 = vld [vmem:[%s1 + $0x10] sm:$0xf]
    %v86 = vld [vmem:[%s1 + $0x14] sm:$0xf]
    %v87 = vld [vmem:[%s1 + $0x18] sm:$0xf]
    %v88 = vld [vmem:[%s1 + $0x1c] sm:$0xf]
    %v89 = vld [vmem:[%s1 + $0x20] sm:$0xf]
    %v90 = vld [vmem:[%s1 + $0x24] sm:$0xf]
    %v91 = vld [vmem:[%s1 + $0x28] sm:$0xf]
    %v92 = vld [vmem:[%s1 + $0x2c] sm:$0xf]
    %v93 = vld [vmem:[%s1 + $0x30] sm:$0xf]
    %v94 = vld [vmem:[%s1 + $0x34] sm:$0xf]
    %v95 = vld [vmem:[%s1 + $0x38] sm:$0xf]
    %v96 = vld [vmem:[%s1 + $0x3c] sm:$0xf]
    %v113 = vunpack.c.l.b16 %v65
    %v114 = vunpack.c.l.b16 %v66
    %v115 = vunpack.c.l.b16 %v67
    %v116 = vunpack.c.l.b16 %v68
    %v117 = vunpack.c.l.b16 %v69
    %v118 = vunpack.c.l.b16 %v70
    %v119 = vunpack.c.l.b16 %v71
    %v120 = vunpack.c.l.b16 %v72
    %v121 = vunpack.c.l.b16 %v73
    %v122 = vunpack.c.l.b16 %v74
    %v123 = vunpack.c.l.b16 %v75
    %v124 = vunpack.c.l.b16 %v76
    %v125 = vunpack.c.l.b16 %v77
    %v126 = vunpack.c.l.b16 %v78
    %v127 = vunpack.c.l.b16 %v79
    %v128 = vunpack.c.l.b16 %v80
    %v129 = vpack.c.b16 %v114, %v113
    %v130 = vpack.c.b16 %v116, %v115
    %v131 = vpack.c.b16 %v118, %v117
    %v132 = vpack.c.b16 %v120, %v119
    %v133 = vpack.c.b16 %v122, %v121
    %v134 = vpack.c.b16 %v124, %v123
    %v135 = vpack.c.b16 %v126, %v125
    %v136 = vpack.c.b16 %v128, %v127
    %v161 = vunpack.c.l.b16 %v81
    %v162 = vunpack.c.l.b16 %v82
    %v163 = vunpack.c.l.b16 %v83
    %v164 = vunpack.c.l.b16 %v84
    %v165 = vunpack.c.l.b16 %v85
    %v166 = vunpack.c.l.b16 %v86
    %v167 = vunpack.c.l.b16 %v87
    %v168 = vunpack.c.l.b16 %v88
    %v169 = vunpack.c.l.b16 %v89
    %v170 = vunpack.c.l.b16 %v90
    %v171 = vunpack.c.l.b16 %v91
    %v172 = vunpack.c.l.b16 %v92
    %v173 = vunpack.c.l.b16 %v93
    %v174 = vunpack.c.l.b16 %v94
    %v175 = vunpack.c.l.b16 %v95
    %v176 = vunpack.c.l.b16 %v96
    %v177 = vpack.c.b16 %v162, %v161
    %v178 = vpack.c.b16 %v164, %v163
    %v179 = vpack.c.b16 %v166, %v165
    %v180 = vpack.c.b16 %v168, %v167
    %v181 = vpack.c.b16 %v170, %v169
    %v182 = vpack.c.b16 %v172, %v171
    %v183 = vpack.c.b16 %v174, %v173
    %v184 = vpack.c.b16 %v176, %v175
    %193 = vmatpush.bf16.msra.mxu0 %v184
    %194 = vmatpush.bf16.msra.mxu0 %v183
    %195 = vmatpush.bf16.msra.mxu0 %v182
    %196 = vmatpush.bf16.msra.mxu0 %v181
    %197 = vmatpush.bf16.msra.mxu0 %v180
    %198 = vmatpush.bf16.msra.mxu0 %v179
    %199 = vmatpush.bf16.msra.mxu0 %v178
    %200 = vmatpush.bf16.msra.mxu0 %v177
    %201 = vmatmul.bf16.gmra.mxu0 %v129
    %v202 = vpop.f32.mrf.mxu0
    %v203 = vadd.f32 0.0, %v202
    %v204 = vpop.f32.mrf.mxu0
    %v205 = vadd.f32 0.0, %v204
    %206 = vmatmul.bf16.gmra.mxu0 %v130
    %v207 = vpop.f32.mrf.mxu0
    %v208 = vadd.f32 0.0, %v207
    %v209 = vpop.f32.mrf.mxu0
    %v210 = vadd.f32 0.0, %v209
    %211 = vmatmul.bf16.gmra.mxu0 %v131
    %v212 = vpop.f32.mrf.mxu0
    %v213 = vadd.f32 0.0, %v212
    %v214 = vpop.f32.mrf.mxu0
    %v215 = vadd.f32 0.0, %v214
    %216 = vmatmul.bf16.gmra.mxu0 %v132
    %v217 = vpop.f32.mrf.mxu0
    %v218 = vadd.f32 0.0, %v217
    %v219 = vpop.f32.mrf.mxu0
    %v220 = vadd.f32 0.0, %v219
    %221 = vmatmul.bf16.gmra.mxu0 %v133
    %v222 = vpop.f32.mrf.mxu0
    %v223 = vadd.f32 0.0, %v222
    %v224 = vpop.f32.mrf.mxu0
    %v225 = vadd.f32 0.0, %v224
    %226 = vmatmul.bf16.gmra.mxu0 %v134
    %v227 = vpop.f32.mrf.mxu0
    %v228 = vadd.f32 0.0, %v227
    %v229 = vpop.f32.mrf.mxu0
    %v230 = vadd.f32 0.0, %v229
    %231 = vmatmul.bf16.gmra.mxu0 %v135
    %v232 = vpop.f32.mrf.mxu0
    %v233 = vadd.f32 0.0, %v232
    %v234 = vpop.f32.mrf.mxu0
    %v235 = vadd.f32 0.0, %v234
    %236 = vmatmul.bf16.gmra.mxu0 %v136
    %v237 = vpop.f32.mrf.mxu0
    %v238 = vadd.f32 0.0, %v237
    %v239 = vpop.f32.mrf.mxu0
    %v240 = vadd.f32 0.0, %v239
    %241 = vdwg.mxu0
    %v242 = vadd.f32 %v49, %v203
    %v243 = vadd.f32 %v50, %v205
    %v244 = vadd.f32 %v51, %v208
    %v245 = vadd.f32 %v52, %v210
    %v246 = vadd.f32 %v53, %v213
    %v247 = vadd.f32 %v54, %v215
    %v248 = vadd.f32 %v55, %v218
    %v249 = vadd.f32 %v56, %v220
    %v250 = vadd.f32 %v57, %v223
    %v251 = vadd.f32 %v58, %v225
    %v252 = vadd.f32 %v59, %v228
    %v253 = vadd.f32 %v60, %v230
    %v254 = vadd.f32 %v61, %v233
    %v255 = vadd.f32 %v62, %v235
    %v256 = vadd.f32 %v63, %v238
    %v257 = vadd.f32 %v64, %v240
    %vm258 = vcmask 261120
    %259 = vst.msk [vmem:[#allocation2] sm:$0xff] %vm258, %v242
    %260 = vst.msk [vmem:[#allocation2 + $0x8] sm:$0xff] %vm258, %v243
    %261 = vst.msk [vmem:[#allocation2 + $0x10] sm:$0xff] %vm258, %v244
    %262 = vst.msk [vmem:[#allocation2 + $0x18] sm:$0xff] %vm258, %v245
    %263 = vst.msk [vmem:[#allocation2 + $0x20] sm:$0xff] %vm258, %v246
    %264 = vst.msk [vmem:[#allocation2 + $0x28] sm:$0xff] %vm258, %v247
    %265 = vst.msk [vmem:[#allocation2 + $0x30] sm:$0xff] %vm258, %v248
    %266 = vst.msk [vmem:[#allocation2 + $0x38] sm:$0xff] %vm258, %v249
    %267 = vst.msk [vmem:[#allocation2 + $0x40] sm:$0xff] %vm258, %v250
    %268 = vst.msk [vmem:[#allocation2 + $0x48] sm:$0xff] %vm258, %v251
    %269 = vst.msk [vmem:[#allocation2 + $0x50] sm:$0xff] %vm258, %v252
    %270 = vst.msk [vmem:[#allocation2 + $0x58] sm:$0xff] %vm258, %v253
    %271 = vst.msk [vmem:[#allocation2 + $0x60] sm:$0xff] %vm258, %v254
    %272 = vst.msk [vmem:[#allocation2 + $0x68] sm:$0xff] %vm258, %v255
    %273 = vst.msk [vmem:[#allocation2 + $0x70] sm:$0xff] %vm258, %v256
    %274 = vst.msk [vmem:[#allocation2 + $0x78] sm:$0xff] %vm258, %v257
    // Predicated region
    $region34: #{tpu_custom_call.1} parent=1 // pred_check
      %p275 = pneg %p28
    $region35: #{tpu_custom_call.1} parent=1 // pred_check_branch
      %277 = sbr.rel (%p275) target = $region37
    $region36: #{tpu_custom_call.1} parent=1 // pred_region
      %v278 = vld [vmem:[#allocation2] sm:$0xff]
      %v279 = vld [vmem:[#allocation2 + $0x8] sm:$0xff]
      %v280 = vld [vmem:[#allocation2 + $0x10] sm:$0xff]
      %v281 = vld [vmem:[#allocation2 + $0x18] sm:$0xff]
      %v282 = vld [vmem:[#allocation2 + $0x20] sm:$0xff]
      %v283 = vld [vmem:[#allocation2 + $0x28] sm:$0xff]
      %v284 = vld [vmem:[#allocation2 + $0x30] sm:$0xff]
      %v285 = vld [vmem:[#allocation2 + $0x38] sm:$0xff]
      %v286 = vld [vmem:[#allocation2 + $0x40] sm:$0xff]
      %v287 = vld [vmem:[#allocation2 + $0x48] sm:$0xff]
      %v288 = vld [vmem:[#allocation2 + $0x50] sm:$0xff]
      %v289 = vld [vmem:[#allocation2 + $0x58] sm:$0xff]
      %v290 = vld [vmem:[#allocation2 + $0x60] sm:$0xff]
      %v291 = vld [vmem:[#allocation2 + $0x68] sm:$0xff]
      %v292 = vld [vmem:[#allocation2 + $0x70] sm:$0xff]
      %v293 = vld [vmem:[#allocation2 + $0x78] sm:$0xff]
      %v294 = vld [vmem:[%s2] sm:$0xff]
      %v295 = vld [vmem:[%s2 + $0x8] sm:$0xff]
      %v296 = vld [vmem:[%s2 + $0x10] sm:$0xff]
      %v297 = vld [vmem:[%s2 + $0x18] sm:$0xff]
      %v298 = vld [vmem:[%s2 + $0x20] sm:$0xff]
      %v299 = vld [vmem:[%s2 + $0x28] sm:$0xff]
      %v300 = vld [vmem:[%s2 + $0x30] sm:$0xff]
      %v301 = vld [vmem:[%s2 + $0x38] sm:$0xff]
      %v302 = vld [vmem:[%s2 + $0x40] sm:$0xff]
      %v303 = vld [vmem:[%s2 + $0x48] sm:$0xff]
      %v304 = vld [vmem:[%s2 + $0x50] sm:$0xff]
      %v305 = vld [vmem:[%s2 + $0x58] sm:$0xff]
      %v306 = vld [vmem:[%s2 + $0x60] sm:$0xff]
      %v307 = vld [vmem:[%s2 + $0x68] sm:$0xff]
      %v308 = vld [vmem:[%s2 + $0x70] sm:$0xff]
      %v309 = vld [vmem:[%s2 + $0x78] sm:$0xff]
      %311 = vset.pattern.permute.xlu0 0
      %312 = vperm.xlu0 %311, %v294
      %v313 = vpop.permute.xlu0 %312
      %316 = vset.pattern.permute.xlu0 0
      %317 = vperm.xlu0 %316, %v295
      %v318 = vpop.permute.xlu0 %317
      %321 = vset.pattern.permute.xlu0 0
      %322 = vperm.xlu0 %321, %v296
      %v323 = vpop.permute.xlu0 %322
      %326 = vset.pattern.permute.xlu0 0
      %327 = vperm.xlu0 %326, %v297
      %v328 = vpop.permute.xlu0 %327
      %331 = vset.pattern.permute.xlu0 0
      %332 = vperm.xlu0 %331, %v298
      %v333 = vpop.permute.xlu0 %332
      %336 = vset.pattern.permute.xlu0 0
      %337 = vperm.xlu0 %336, %v299
      %v338 = vpop.permute.xlu0 %337
      %341 = vset.pattern.permute.xlu0 0
      %342 = vperm.xlu0 %341, %v300
      %v343 = vpop.permute.xlu0 %342
      %346 = vset.pattern.permute.xlu0 0
      %347 = vperm.xlu0 %346, %v301
      %v348 = vpop.permute.xlu0 %347
      %351 = vset.pattern.permute.xlu0 0
      %352 = vperm.xlu0 %351, %v302
      %v353 = vpop.permute.xlu0 %352
      %356 = vset.pattern.permute.xlu0 0
      %357 = vperm.xlu0 %356, %v303
      %v358 = vpop.permute.xlu0 %357
      %361 = vset.pattern.permute.xlu0 0
      %362 = vperm.xlu0 %361, %v304
      %v363 = vpop.permute.xlu0 %362
      %366 = vset.pattern.permute.xlu0 0
      %367 = vperm.xlu0 %366, %v305
      %v368 = vpop.permute.xlu0 %367
      %371 = vset.pattern.permute.xlu0 0
      %372 = vperm.xlu0 %371, %v306
      %v373 = vpop.permute.xlu0 %372
      %376 = vset.pattern.permute.xlu0 0
      %377 = vperm.xlu0 %376, %v307
      %v378 = vpop.permute.xlu0 %377
      %381 = vset.pattern.permute.xlu0 0
      %382 = vperm.xlu0 %381, %v308
      %v383 = vpop.permute.xlu0 %382
      %386 = vset.pattern.permute.xlu0 0
      %387 = vperm.xlu0 %386, %v309
      %v388 = vpop.permute.xlu0 %387
      %v390 = vmul.f32 %v278, %v313
      %v391 = vmul.f32 %v279, %v318
      %v392 = vmul.f32 %v280, %v323
      %v393 = vmul.f32 %v281, %v328
      %v394 = vmul.f32 %v282, %v333
      %v395 = vmul.f32 %v283, %v338
      %v396 = vmul.f32 %v284, %v343
      %v397 = vmul.f32 %v285, %v348
      %v398 = vmul.f32 %v286, %v353
      %v399 = vmul.f32 %v287, %v358
      %v400 = vmul.f32 %v288, %v363
      %v401 = vmul.f32 %v289, %v368
      %v402 = vmul.f32 %v290, %v373
      %v403 = vmul.f32 %v291, %v378
      %v404 = vmul.f32 %v292, %v383
      %v405 = vmul.f32 %v293, %v388
      %v406 = vpack.c.bf16 %v391, %v390
      %v407 = vpack.c.bf16 %v393, %v392
      %v408 = vpack.c.bf16 %v395, %v394
      %v409 = vpack.c.bf16 %v397, %v396
      %v410 = vpack.c.bf16 %v399, %v398
      %v411 = vpack.c.bf16 %v401, %v400
      %v412 = vpack.c.bf16 %v403, %v402
      %v413 = vpack.c.bf16 %v405, %v404
      %v414 = vld [vmem:[%s3] sm:$0xf]
      %v415 = vld [vmem:[%s3 + $0x4] sm:$0xf]
      %v416 = vld [vmem:[%s3 + $0x8] sm:$0xf]
      %v417 = vld [vmem:[%s3 + $0xc] sm:$0xf]
      %v418 = vld [vmem:[%s3 + $0x10] sm:$0xf]
      %v419 = vld [vmem:[%s3 + $0x14] sm:$0xf]
      %v420 = vld [vmem:[%s3 + $0x18] sm:$0xf]
      %v421 = vld [vmem:[%s3 + $0x1c] sm:$0xf]
      %v422 = vld [vmem:[%s3 + $0x20] sm:$0xf]
      %v423 = vld [vmem:[%s3 + $0x24] sm:$0xf]
      %v424 = vld [vmem:[%s3 + $0x28] sm:$0xf]
      %v425 = vld [vmem:[%s3 + $0x2c] sm:$0xf]
      %v426 = vld [vmem:[%s3 + $0x30] sm:$0xf]
      %v427 = vld [vmem:[%s3 + $0x34] sm:$0xf]
      %v428 = vld [vmem:[%s3 + $0x38] sm:$0xf]
      %v429 = vld [vmem:[%s3 + $0x3c] sm:$0xf]
      %v430 = vld [vmem:[%s4] sm:$0xf]
      %v431 = vld [vmem:[%s4 + $0x4] sm:$0xf]
      %v432 = vld [vmem:[%s4 + $0x8] sm:$0xf]
      %v433 = vld [vmem:[%s4 + $0xc] sm:$0xf]
      %v434 = vld [vmem:[%s5] sm:$0xf]
      %v435 = vld [vmem:[%s5 + $0x4] sm:$0xf]
      %v436 = vld [vmem:[%s5 + $0x8] sm:$0xf]
      %v437 = vld [vmem:[%s5 + $0xc] sm:$0xf]
      %v442 = vunpack.c.l.b16 %v434
      %v443 = vunpack.c.l.b16 %v435
      %v444 = vunpack.c.l.b16 %v436
      %v445 = vunpack.c.l.b16 %v437
      %v446 = vpack.c.b16 %v443, %v442
      %v447 = vpack.c.b16 %v445, %v444
      %v451 = vsel %vm258, %v406, 0
      %v454 = vsel %vm258, %v407, 0
      %v457 = vsel %vm258, %v408, 0
      %v460 = vsel %vm258, %v409, 0
      %v463 = vsel %vm258, %v410, 0
      %v466 = vsel %vm258, %v411, 0
      %v469 = vsel %vm258, %v412, 0
      %v472 = vsel %vm258, %v413, 0
      %474 = vmatpush.bf16.msra.mxu0 0
      %475 = vmatpush.bf16.msra.mxu0 0
      %476 = vmatpush.bf16.msra.mxu0 0
      %477 = vmatpush.bf16.msra.mxu0 0
      %478 = vmatpush.bf16.msra.mxu0 0
      %479 = vmatpush.bf16.msra.mxu0 0
      %480 = vmatpush.bf16.msra.mxu0 %v447
      %481 = vmatpush.bf16.msra.mxu0 %v446
      %482 = vmatmul.bf16.gmra.mxu0 %v451
      %v483 = vpop.f32.mrf.mxu0
      %v484 = vadd.f32 0.0, %v483
      %v485 = vpop.f32.mrf.mxu0
      %v486 = vadd.f32 0.0, %v485
      %487 = vmatmul.bf16.gmra.mxu0 %v454
      %v488 = vpop.f32.mrf.mxu0
      %v489 = vadd.f32 0.0, %v488
      %v490 = vpop.f32.mrf.mxu0
      %v491 = vadd.f32 0.0, %v490
      %492 = vmatmul.bf16.gmra.mxu0 %v457
      %v493 = vpop.f32.mrf.mxu0
      %v494 = vadd.f32 0.0, %v493
      %v495 = vpop.f32.mrf.mxu0
      %v496 = vadd.f32 0.0, %v495
      %497 = vmatmul.bf16.gmra.mxu0 %v460
      %v498 = vpop.f32.mrf.mxu0
      %v499 = vadd.f32 0.0, %v498
      %v500 = vpop.f32.mrf.mxu0
      %v501 = vadd.f32 0.0, %v500
      %502 = vmatmul.bf16.gmra.mxu0 %v463
      %v503 = vpop.f32.mrf.mxu0
      %v504 = vadd.f32 0.0, %v503
      %v505 = vpop.f32.mrf.mxu0
      %v506 = vadd.f32 0.0, %v505
      %507 = vmatmul.bf16.gmra.mxu0 %v466
      %v508 = vpop.f32.mrf.mxu0
      %v509 = vadd.f32 0.0, %v508
      %v510 = vpop.f32.mrf.mxu0
      %v511 = vadd.f32 0.0, %v510
      %512 = vmatmul.bf16.gmra.mxu0 %v469
      %v513 = vpop.f32.mrf.mxu0
      %v514 = vadd.f32 0.0, %v513
      %v515 = vpop.f32.mrf.mxu0
      %v516 = vadd.f32 0.0, %v515
      %517 = vmatmul.bf16.gmra.mxu0 %v472
      %v518 = vpop.f32.mrf.mxu0
      %v519 = vadd.f32 0.0, %v518
      %v520 = vpop.f32.mrf.mxu0
      %v521 = vadd.f32 0.0, %v520
      %522 = vdwg.mxu0
      %v539 = vunpack.c.l.b16 %v414
      %v540 = vunpack.c.l.b16 %v415
      %v541 = vunpack.c.l.b16 %v416
      %v542 = vunpack.c.l.b16 %v417
      %v543 = vunpack.c.l.b16 %v418
      %v544 = vunpack.c.l.b16 %v419
      %v545 = vunpack.c.l.b16 %v420
      %v546 = vunpack.c.l.b16 %v421
      %v547 = vunpack.c.l.b16 %v422
      %v548 = vunpack.c.l.b16 %v423
      %v549 = vunpack.c.l.b16 %v424
      %v550 = vunpack.c.l.b16 %v425
      %v551 = vunpack.c.l.b16 %v426
      %v552 = vunpack.c.l.b16 %v427
      %v553 = vunpack.c.l.b16 %v428
      %v554 = vunpack.c.l.b16 %v429
      %v555 = vpack.c.b16 %v540, %v539
      %v556 = vpack.c.b16 %v542, %v541
      %v557 = vpack.c.b16 %v544, %v543
      %v558 = vpack.c.b16 %v546, %v545
      %v559 = vpack.c.b16 %v548, %v547
      %v560 = vpack.c.b16 %v550, %v549
      %v561 = vpack.c.b16 %v552, %v551
      %v562 = vpack.c.b16 %v554, %v553
      %v567 = vunpack.c.l.b16 %v430
      %v568 = vunpack.c.l.b16 %v431
      %v569 = vunpack.c.l.b16 %v432
      %v570 = vunpack.c.l.b16 %v433
      %v571 = vpack.c.b16 %v568, %v567
      %v572 = vpack.c.b16 %v570, %v569
      %v576 = vsel %vm258, %v555, 0
      %v579 = vsel %vm258, %v556, 0
      %v582 = vsel %vm258, %v557, 0
      %v585 = vsel %vm258, %v558, 0
      %v588 = vsel %vm258, %v559, 0
      %v591 = vsel %vm258, %v560, 0
      %v594 = vsel %vm258, %v561, 0
      %v597 = vsel %vm258, %v562, 0
      %599 = vmatpush.bf16.msra.mxu0 0
      %600 = vmatpush.bf16.msra.mxu0 0
      %601 = vmatpush.bf16.msra.mxu0 0
      %602 = vmatpush.bf16.msra.mxu0 0
      %603 = vmatpush.bf16.msra.mxu0 0
      %604 = vmatpush.bf16.msra.mxu0 0
      %605 = vmatpush.bf16.msra.mxu0 %v572
      %606 = vmatpush.bf16.msra.mxu0 %v571
      %607 = vmatmul.bf16.gmra.mxu0 %v576
      %v608 = vpop.f32.mrf.mxu0
      %v609 = vadd.f32 %v484, %v608
      %v610 = vpop.f32.mrf.mxu0
      %v611 = vadd.f32 %v486, %v610
      %612 = vmatmul.bf16.gmra.mxu0 %v579
      %v613 = vpop.f32.mrf.mxu0
      %v614 = vadd.f32 %v489, %v613
      %v615 = vpop.f32.mrf.mxu0
      %v616 = vadd.f32 %v491, %v615
      %617 = vmatmul.bf16.gmra.mxu0 %v582
      %v618 = vpop.f32.mrf.mxu0
      %v619 = vadd.f32 %v494, %v618
      %v620 = vpop.f32.mrf.mxu0
      %v621 = vadd.f32 %v496, %v620
      %622 = vmatmul.bf16.gmra.mxu0 %v585
      %v623 = vpop.f32.mrf.mxu0
      %v624 = vadd.f32 %v499, %v623
      %v625 = vpop.f32.mrf.mxu0
      %v626 = vadd.f32 %v501, %v625
      %627 = vmatmul.bf16.gmra.mxu0 %v588
      %v628 = vpop.f32.mrf.mxu0
      %v629 = vadd.f32 %v504, %v628
      %v630 = vpop.f32.mrf.mxu0
      %v631 = vadd.f32 %v506, %v630
      %632 = vmatmul.bf16.gmra.mxu0 %v591
      %v633 = vpop.f32.mrf.mxu0
      %v634 = vadd.f32 %v509, %v633
      %v635 = vpop.f32.mrf.mxu0
      %v636 = vadd.f32 %v511, %v635
      %637 = vmatmul.bf16.gmra.mxu0 %v594
      %v638 = vpop.f32.mrf.mxu0
      %v639 = vadd.f32 %v514, %v638
      %v640 = vpop.f32.mrf.mxu0
      %v641 = vadd.f32 %v516, %v640
      %642 = vmatmul.bf16.gmra.mxu0 %v597
      %v643 = vpop.f32.mrf.mxu0
      %v644 = vadd.f32 %v519, %v643
      %v645 = vpop.f32.mrf.mxu0
      %v646 = vadd.f32 %v521, %v645
      %647 = vdwg.mxu0
      %v648 = vmax.f32 %v609, 0.0
      %v649 = vmax.f32 %v611, 0.0
      %v650 = vmax.f32 %v614, 0.0
      %v651 = vmax.f32 %v616, 0.0
      %v652 = vmax.f32 %v619, 0.0
      %v653 = vmax.f32 %v621, 0.0
      %v654 = vmax.f32 %v624, 0.0
      %v655 = vmax.f32 %v626, 0.0
      %v656 = vmax.f32 %v629, 0.0
      %v657 = vmax.f32 %v631, 0.0
      %v658 = vmax.f32 %v634, 0.0
      %v659 = vmax.f32 %v636, 0.0
      %v660 = vmax.f32 %v639, 0.0
      %v661 = vmax.f32 %v641, 0.0
      %v662 = vmax.f32 %v644, 0.0
      %v663 = vmax.f32 %v646, 0.0
      %v664 = vpack.c.bf16 %v649, %v648
      %v665 = vpack.c.bf16 %v651, %v650
      %v666 = vpack.c.bf16 %v653, %v652
      %v667 = vpack.c.bf16 %v655, %v654
      %v668 = vpack.c.bf16 %v657, %v656
      %v669 = vpack.c.bf16 %v659, %v658
      %v670 = vpack.c.bf16 %v661, %v660
      %v671 = vpack.c.bf16 %v663, %v662
      %v672 = vld [vmem:[%s6] sm:$0xf]
      %v673 = vld [vmem:[%s6 + $0x4] sm:$0xf]
      %v674 = vld [vmem:[%s6 + $0x8] sm:$0xf]
      %v675 = vld [vmem:[%s6 + $0xc] sm:$0xf]
      %v676 = vld [vmem:[%s6 + $0x10] sm:$0xf]
      %v677 = vld [vmem:[%s6 + $0x14] sm:$0xf]
      %v678 = vld [vmem:[%s6 + $0x18] sm:$0xf]
      %v679 = vld [vmem:[%s6 + $0x1c] sm:$0xf]
      %v680 = vld [vmem:[%s6 + $0x20] sm:$0xf]
      %v681 = vld [vmem:[%s6 + $0x24] sm:$0xf]
      %v682 = vld [vmem:[%s6 + $0x28] sm:$0xf]
      %v683 = vld [vmem:[%s6 + $0x2c] sm:$0xf]
      %v684 = vld [vmem:[%s6 + $0x30] sm:$0xf]
      %v685 = vld [vmem:[%s6 + $0x34] sm:$0xf]
      %v686 = vld [vmem:[%s6 + $0x38] sm:$0xf]
      %v687 = vld [vmem:[%s6 + $0x3c] sm:$0xf]
      %v704 = vunpack.c.l.b16 %v672
      %v705 = vunpack.c.l.b16 %v673
      %v706 = vunpack.c.l.b16 %v674
      %v707 = vunpack.c.l.b16 %v675
      %v708 = vunpack.c.l.b16 %v676
      %v709 = vunpack.c.l.b16 %v677
      %v710 = vunpack.c.l.b16 %v678
      %v711 = vunpack.c.l.b16 %v679
      %v712 = vunpack.c.l.b16 %v680
      %v713 = vunpack.c.l.b16 %v681
      %v714 = vunpack.c.l.b16 %v682
      %v715 = vunpack.c.l.b16 %v683
      %v716 = vunpack.c.l.b16 %v684
      %v717 = vunpack.c.l.b16 %v685
      %v718 = vunpack.c.l.b16 %v686
      %v719 = vunpack.c.l.b16 %v687
      %v720 = vpack.c.b16 %v705, %v704
      %v721 = vpack.c.b16 %v707, %v706
      %v722 = vpack.c.b16 %v709, %v708
      %v723 = vpack.c.b16 %v711, %v710
      %v724 = vpack.c.b16 %v713, %v712
      %v725 = vpack.c.b16 %v715, %v714
      %v726 = vpack.c.b16 %v717, %v716
      %v727 = vpack.c.b16 %v719, %v718
      %736 = vmatpush.bf16.msra.mxu0 %v727
      %737 = vmatpush.bf16.msra.mxu0 %v726
      %738 = vmatpush.bf16.msra.mxu0 %v725
      %739 = vmatpush.bf16.msra.mxu0 %v724
      %740 = vmatpush.bf16.msra.mxu0 %v723
      %741 = vmatpush.bf16.msra.mxu0 %v722
      %742 = vmatpush.bf16.msra.mxu0 %v721
      %743 = vmatpush.bf16.msra.mxu0 %v720
      %744 = vmatmul.bf16.gmra.mxu0 %v664
      %v745 = vpop.f32.mrf.mxu0
      %v746 = vadd.f32 0.0, %v745
      %v747 = vpop.f32.mrf.mxu0
      %v748 = vadd.f32 0.0, %v747
      %749 = vmatmul.bf16.gmra.mxu0 %v665
      %v750 = vpop.f32.mrf.mxu0
      %v751 = vadd.f32 0.0, %v750
      %v752 = vpop.f32.mrf.mxu0
      %v753 = vadd.f32 0.0, %v752
      %754 = vmatmul.bf16.gmra.mxu0 %v666
      %v755 = vpop.f32.mrf.mxu0
      %v756 = vadd.f32 0.0, %v755
      %v757 = vpop.f32.mrf.mxu0
      %v758 = vadd.f32 0.0, %v757
      %759 = vmatmul.bf16.gmra.mxu0 %v667
      %v760 = vpop.f32.mrf.mxu0
      %v761 = vadd.f32 0.0, %v760
      %v762 = vpop.f32.mrf.mxu0
      %v763 = vadd.f32 0.0, %v762
      %764 = vmatmul.bf16.gmra.mxu0 %v668
      %v765 = vpop.f32.mrf.mxu0
      %v766 = vadd.f32 0.0, %v765
      %v767 = vpop.f32.mrf.mxu0
      %v768 = vadd.f32 0.0, %v767
      %769 = vmatmul.bf16.gmra.mxu0 %v669
      %v770 = vpop.f32.mrf.mxu0
      %v771 = vadd.f32 0.0, %v770
      %v772 = vpop.f32.mrf.mxu0
      %v773 = vadd.f32 0.0, %v772
      %774 = vmatmul.bf16.gmra.mxu0 %v670
      %v775 = vpop.f32.mrf.mxu0
      %v776 = vadd.f32 0.0, %v775
      %v777 = vpop.f32.mrf.mxu0
      %v778 = vadd.f32 0.0, %v777
      %779 = vmatmul.bf16.gmra.mxu0 %v671
      %v780 = vpop.f32.mrf.mxu0
      %v781 = vadd.f32 0.0, %v780
      %v782 = vpop.f32.mrf.mxu0
      %v783 = vadd.f32 0.0, %v782
      %784 = vdwg.mxu0
      %v785 = vpack.c.bf16 %v746, %v746
      %v786 = vpack.c.bf16 %v748, %v748
      %v787 = vpack.c.bf16 %v751, %v751
      %v788 = vpack.c.bf16 %v753, %v753
      %v789 = vpack.c.bf16 %v756, %v756
      %v790 = vpack.c.bf16 %v758, %v758
      %v791 = vpack.c.bf16 %v761, %v761
      %v792 = vpack.c.bf16 %v763, %v763
      %v793 = vpack.c.bf16 %v766, %v766
      %v794 = vpack.c.bf16 %v768, %v768
      %v795 = vpack.c.bf16 %v771, %v771
      %v796 = vpack.c.bf16 %v773, %v773
      %v797 = vpack.c.bf16 %v776, %v776
      %v798 = vpack.c.bf16 %v778, %v778
      %v799 = vpack.c.bf16 %v781, %v781
      %v800 = vpack.c.bf16 %v783, %v783
      %801 = vst [vmem:[#allocation3] sm:$0xf] %v785
      %802 = vst [vmem:[#allocation3 + $0x4] sm:$0xf] %v786
      %803 = vst [vmem:[#allocation3 + $0x8] sm:$0xf] %v787
      %804 = vst [vmem:[#allocation3 + $0xc] sm:$0xf] %v788
      %805 = vst [vmem:[#allocation3 + $0x10] sm:$0xf] %v789
      %806 = vst [vmem:[#allocation3 + $0x14] sm:$0xf] %v790
      %807 = vst [vmem:[#allocation3 + $0x18] sm:$0xf] %v791
      %808 = vst [vmem:[#allocation3 + $0x1c] sm:$0xf] %v792
      %809 = vst [vmem:[#allocation3 + $0x20] sm:$0xf] %v793
      %810 = vst [vmem:[#allocation3 + $0x24] sm:$0xf] %v794
      %811 = vst [vmem:[#allocation3 + $0x28] sm:$0xf] %v795
      %812 = vst [vmem:[#allocation3 + $0x2c] sm:$0xf] %v796
      %813 = vst [vmem:[#allocation3 + $0x30] sm:$0xf] %v797
      %814 = vst [vmem:[#allocation3 + $0x34] sm:$0xf] %v798
      %815 = vst [vmem:[#allocation3 + $0x38] sm:$0xf] %v799
      %816 = vst [vmem:[#allocation3 + $0x3c] sm:$0xf] %v800
    $region37: #{tpu_custom_call.1} parent=1 // pred_fallthru
      _
    // Predicated region
    $region38: #{tpu_custom_call.1} parent=1 // pred_check
      _
    $region39: #{tpu_custom_call.1} parent=1 // pred_check_branch
      %818 = sbr.rel (0) target = $region41
    $region40: #{tpu_custom_call.1} parent=1 // pred_region
      %820 = vsyncadd [#allocation4], 0
      %s821 = sshll.u32 [#allocation3], 4
      %s822 = int_to_ptr.vmem [resolvable:$true] %s821
      %s823 = sshll.u32 %s7, 4
      %s824 = int_to_ptr.hbm [resolvable:$true] %s823
      %829 = dma.vmem_to_hbm [thread:$0]  %s822, 1024, %s824, [#allocation4], 64, 64, 4
    $region41: #{tpu_custom_call.1} parent=1 // pred_fallthru
      _
    // Predicated region
    $region42: #{tpu_custom_call.1} parent=1 // pred_check
      _
    $region43: #{tpu_custom_call.1} parent=1 // pred_check_branch
      %831 = sbr.rel (0) target = $region45
    $region44: #{tpu_custom_call.1} parent=1 // pred_region
      %833 = dma.done [#allocation4], 1024
    $region45: #{tpu_custom_call.1} parent=1 // pred_fallthru
      _
    %834 = vsyncpa [#allocation4], 1

</llo_original>
